<compile_context>
chip_gen: v5e
topology: v5e:2x2
jax: 0.10.0
libtpu: 0.0.40
codegen_flags: <defaults>
</compile_context>

<pallas_src>
import math

import jax
import jax.numpy as jnp
from jax.experimental import pallas as pl
from jax.experimental.pallas import tpu as pltpu


def _round_up(x: int, m: int) -> int:
    return ((x + m - 1) // m) * m


# ---------------------------------------------------------------------------
# Kernel: one [tm, *] row-block of the full embed stack
# ---------------------------------------------------------------------------
def _single_input_embedding_kernel(x_ref, w1_ref, w23_ref, vec_ref, o_ref):
    out_channel = o_ref.shape[-1]          # real channel count
    e_pad = vec_ref.shape[-1]              # lane-padded channel count
    inv_e = 1.0 / float(out_channel)
    eps = 1e-5

    vec = vec_ref[...]                     # (16, e_pad) f32: b1,g1,be1,b2,g2,be2,b3,g3,be3
    b1, g1, be1 = vec[0:1], vec[1:2], vec[2:3]
    b2, g2, be2 = vec[3:4], vec[4:5], vec[5:6]
    b3, g3, be3 = vec[6:7], vec[7:8], vec[8:9]

    def layer_norm(h, g, b):
        # Padded lanes of h are exactly 0 (zero-padded weight cols + zero bias),
        # so full-width sums equal sums over the real out_channel lanes.
        mu = jnp.sum(h, axis=-1, keepdims=True) * inv_e
        var = jnp.sum(h * h, axis=-1, keepdims=True) * inv_e - mu * mu
        var = jnp.maximum(var, 0.0)
        return (h - mu) * jax.lax.rsqrt(var + eps) * g + b

    # Linear -> LayerNorm -> ReLU   (K = d_pad is tiny; keep f32 operands)
    h = jnp.dot(x_ref[...], w1_ref[...], preferred_element_type=jnp.float32) + b1
    h = jnp.maximum(layer_norm(h, g1, be1), 0.0)
    # Linear -> LayerNorm -> ReLU   (bf16 MXU operands, f32 accumulation)
    h = jnp.dot(h.astype(jnp.bfloat16), w23_ref[0],
                preferred_element_type=jnp.float32) + b2
    h = jnp.maximum(layer_norm(h, g2, be2), 0.0)
    # Linear -> LayerNorm
    h = jnp.dot(h.astype(jnp.bfloat16), w23_ref[1],
                preferred_element_type=jnp.float32) + b3
    h = layer_norm(h, g3, be3)

    if out_channel == e_pad:               # trace-time branch
        o_ref[...] = h
    else:
        o_ref[...] = h[:, :out_channel]


# ---------------------------------------------------------------------------
# Parameters (mirrors init_weights: xavier_uniform / zeros / ones)
# ---------------------------------------------------------------------------
def init_params(key, in_channel, out_channel):
    def xavier(k, fan_in, fan_out, shape):
        bound = math.sqrt(6.0 / (fan_in + fan_out))
        return jax.random.uniform(k, shape, jnp.float32, -bound, bound)

    E = out_channel
    k1, k2, k3 = jax.random.split(key, 3)
    zeros = lambda: jnp.zeros((E,), jnp.float32)
    ones = lambda: jnp.ones((E,), jnp.float32)
    return dict(
        w1=xavier(k1, in_channel, E, (in_channel, E)), b1=zeros(), g1=ones(), be1=zeros(),
        w2=xavier(k2, E, E, (E, E)), b2=zeros(), g2=ones(), be2=zeros(),
        w3=xavier(k3, E, E, (E, E)), b3=zeros(), g3=ones(), be3=zeros(),
    )


def _prep_params(p, in_channel, out_channel):
    """Zero-pad channels to lane-dense widths and pack into 3 arrays."""
    d_pad = _round_up(max(in_channel, 1), 8)
    e_pad = _round_up(out_channel, 128)

    # w1 stays f32 (first matmul runs in f32).
    w1 = jnp.pad(p["w1"].astype(jnp.float32),
                 ((0, d_pad - in_channel), (0, e_pad - out_channel)))

    def pad_w(w):
        return jnp.pad(w, ((0, e_pad - out_channel), (0, e_pad - out_channel)))

    w23 = jnp.stack([pad_w(p["w2"]), pad_w(p["w3"])]).astype(jnp.bfloat16)

    def pad_v(v):
        return jnp.pad(v.astype(jnp.float32), (0, e_pad - out_channel))

    rows = [p["b1"], p["g1"], p["be1"],
            p["b2"], p["g2"], p["be2"],
            p["b3"], p["g3"], p["be3"]]
    vec = jnp.stack([pad_v(r) for r in rows])          # (9, e_pad)
    vec = jnp.pad(vec, ((0, 16 - vec.shape[0]), (0, 0)))  # (16, e_pad), sublane-aligned

    return (w1, w23, vec), d_pad, e_pad


# ---------------------------------------------------------------------------
# Wrapper
# ---------------------------------------------------------------------------
def single_input_embedding(x, params, *, block_m=1024):
    *lead, in_channel = x.shape
    out_channel = params["w3"].shape[1]
    M = 1
    for s in lead:
        M *= s
    x2d = x.reshape(M, in_channel).astype(jnp.float32)

    (w1, w23, vec), d_pad, e_pad = _prep_params(params, in_channel, out_channel)

    # Only the (cheap, fusible) channel pad of x; no M padding.
    if d_pad != in_channel:
        x2d = jnp.pad(x2d, ((0, 0), (0, d_pad - in_channel)))

    # Big row tile for HBM-roofline efficiency, but guarantee >= 2 grid blocks
    # (when M allows) so both v7x TensorCores get work; always 8-aligned.
    tm = min(block_m, max(8, _round_up((M + 1) // 2, 8)))
    grid = (pl.cdiv(M, tm),)

    in_specs = [
        pl.BlockSpec((tm, d_pad), lambda i: (i, 0)),          # x rows
        pl.BlockSpec((d_pad, e_pad), lambda i: (0, 0)),       # w1 (grid-invariant)
        pl.BlockSpec((2, e_pad, e_pad), lambda i: (0, 0, 0)),  # w2/w3 stacked
        pl.BlockSpec((16, e_pad), lambda i: (0, 0)),          # packed bias/gamma/beta
    ]

    out = pl.pallas_call(
        _single_input_embedding_kernel,
        grid=grid,
        in_specs=in_specs,
        out_specs=pl.BlockSpec((tm, out_channel), lambda i: (i, 0)),
        out_shape=jax.ShapeDtypeStruct((M, out_channel), jnp.float32),
        compiler_params=pltpu.CompilerParams(dimension_semantics=("parallel",)),
    )(x2d, w1, w23, vec)

    return out.reshape(*lead, out_channel)


# ---------------------------------------------------------------------------
# Pure-JAX reference (f32) for a sanity check
# ---------------------------------------------------------------------------
def _reference(x, p):
    def ln(h, g, b, eps=1e-5):
        mu = jnp.mean(h, -1, keepdims=True)
        var = jnp.mean((h - mu) ** 2, -1, keepdims=True)
        return (h - mu) * jax.lax.rsqrt(var + eps) * g + b

    h = x @ p["w1"] + p["b1"]
    h = jnp.maximum(ln(h, p["g1"], p["be1"]), 0.0)
    h = h @ p["w2"] + p["b2"]
    h = jnp.maximum(ln(h, p["g2"], p["be2"]), 0.0)
    h = h @ p["w3"] + p["b3"]
    return ln(h, p["g3"], p["be3"])


# ---------------------------------------------------------------------------
if __name__ == "__main__":
    # Small shapes consistent with the module's use in the local encoder:
    # historical_steps T=8, agents N=2, node_dim=7, embed_dim=32.
    T, N, IN_C, OUT_C = 8, 2, 7, 32

    key = jax.random.PRNGKey(0)
    kx, kp, kx2 = jax.random.split(key, 3)
    x = jax.random.normal(kx, (T, N, IN_C), jnp.float32)
    params = init_params(kp, IN_C, OUT_C)

    out = single_input_embedding(x, params)
    out = jax.block_until_ready(out)

    assert out.shape == (T, N, OUT_C) and out.dtype == jnp.float32
    assert bool(jnp.all(jnp.isfinite(out)))

    # First matmul is exact f32; later matmuls use bf16 MXU operands (f32 acc).
    ref = _reference(x, params)
    max_err = float(jnp.max(jnp.abs(out - ref)))
    assert max_err < 0.1, f"max abs err vs f32 reference too large: {max_err}"

    # Second check: M not a multiple of the row tile (exercises the masked
    # partial last block: garbage rows are row-contained and their writes dropped).
    x2 = jax.random.normal(kx2, (5, 3, IN_C), jnp.float32)
    out2 = jax.block_until_ready(single_input_embedding(x2, params))
    ref2 = _reference(x2, params)
    assert out2.shape == (5, 3, OUT_C)
    max_err2 = float(jnp.max(jnp.abs(out2 - ref2)))
    assert max_err2 < 0.1, f"ragged-M max abs err too large: {max_err2}"

    print("KERNEL_OK")
</pallas_src>

<mosaic_0001>
module attributes {stable_mosaic.version = 11 : i64} {
  func.func @_single_input_embedding_kernel(%arg0: i32, %arg1: memref<8x8xf32, #tpu.memory_space<vmem>>, %arg2: memref<8x128xf32, #tpu.memory_space<vmem>>, %arg3: memref<2x128x128xbf16, #tpu.memory_space<vmem>>, %arg4: memref<16x128xf32, #tpu.memory_space<vmem>>, %arg5: memref<8x32xf32, #tpu.memory_space<vmem>>) attributes {dimension_semantics = [#tpu.dimension_semantics<parallel>], iteration_bounds = array<i64: 2>, scalar_prefetch = 0 : i64, scratch_operands = 0 : i64, tpu.core_type = #tpu.core_type<tc>, window_params = [{transform_indices = @transform_0, window_bounds = array<i64: 8, 8>}, {pipeline_mode = #tpu.pipeline_mode<synchronous>, transform_indices = @transform_1, window_bounds = array<i64: 8, 128>}, {pipeline_mode = #tpu.pipeline_mode<synchronous>, transform_indices = @transform_2, window_bounds = array<i64: 2, 128, 128>}, {pipeline_mode = #tpu.pipeline_mode<synchronous>, transform_indices = @transform_3, window_bounds = array<i64: 16, 128>}, {transform_indices = @transform_4, window_bounds = array<i64: 8, 32>}]} {
    %c0 = arith.constant 0 : index
    %c0_0 = arith.constant 0 : index
    %0 = vector.load %arg4[%c0, %c0_0] : memref<16x128xf32, #tpu.memory_space<vmem>>, vector<16x128xf32>
    %1 = vector.extract_strided_slice %0 {offsets = [0, 0], sizes = [1, 128], strides = [1, 1]} : vector<16x128xf32> to vector<1x128xf32>
    %2 = vector.extract_strided_slice %0 {offsets = [1, 0], sizes = [1, 128], strides = [1, 1]} : vector<16x128xf32> to vector<1x128xf32>
    %3 = vector.extract_strided_slice %0 {offsets = [2, 0], sizes = [1, 128], strides = [1, 1]} : vector<16x128xf32> to vector<1x128xf32>
    %4 = vector.extract_strided_slice %0 {offsets = [3, 0], sizes = [1, 128], strides = [1, 1]} : vector<16x128xf32> to vector<1x128xf32>
    %5 = vector.extract_strided_slice %0 {offsets = [4, 0], sizes = [1, 128], strides = [1, 1]} : vector<16x128xf32> to vector<1x128xf32>
    %6 = vector.extract_strided_slice %0 {offsets = [5, 0], sizes = [1, 128], strides = [1, 1]} : vector<16x128xf32> to vector<1x128xf32>
    %7 = vector.extract_strided_slice %0 {offsets = [6, 0], sizes = [1, 128], strides = [1, 1]} : vector<16x128xf32> to vector<1x128xf32>
    %8 = vector.extract_strided_slice %0 {offsets = [7, 0], sizes = [1, 128], strides = [1, 1]} : vector<16x128xf32> to vector<1x128xf32>
    %9 = vector.extract_strided_slice %0 {offsets = [8, 0], sizes = [1, 128], strides = [1, 1]} : vector<16x128xf32> to vector<1x128xf32>
    %c0_1 = arith.constant 0 : index
    %c0_2 = arith.constant 0 : index
    %10 = vector.load %arg1[%c0_1, %c0_2] : memref<8x8xf32, #tpu.memory_space<vmem>>, vector<8x8xf32>
    %c0_3 = arith.constant 0 : index
    %c0_4 = arith.constant 0 : index
    %11 = vector.load %arg2[%c0_3, %c0_4] : memref<8x128xf32, #tpu.memory_space<vmem>>, vector<8x128xf32>
    %cst = arith.constant dense<0.000000e+00> : vector<8x128xf32>
    %12 = tpu.matmul %10, %11, %cst {dimension_numbers = #tpu.dot_dimension_numbers<[1], [0], [0], [1], [0, 0, 1, 1], [], []>} : vector<8x8xf32>, vector<8x128xf32>, vector<8x128xf32> -> vector<8x128xf32>
    %13 = vector.broadcast %1 : vector<1x128xf32> to vector<8x128xf32>
    %14 = arith.addf %12, %13 : vector<8x128xf32>
    %cst_5 = arith.constant dense<0.000000e+00> : vector<8xf32>
    %15 = vector.multi_reduction <add>, %14, %cst_5 [1] : vector<8x128xf32> to vector<8xf32>
    %16 = vector.shape_cast %15 : vector<8xf32> to vector<8x1xf32>
    %cst_6 = arith.constant 3.125000e-02 : f32
    %17 = vector.broadcast %cst_6 : f32 to vector<8x1xf32>
    %18 = arith.mulf %16, %17 : vector<8x1xf32>
    %19 = arith.mulf %14, %14 : vector<8x128xf32>
    %cst_7 = arith.constant dense<0.000000e+00> : vector<8xf32>
    %20 = vector.multi_reduction <add>, %19, %cst_7 [1] : vector<8x128xf32> to vector<8xf32>
    %21 = vector.shape_cast %20 : vector<8xf32> to vector<8x1xf32>
    %cst_8 = arith.constant 3.125000e-02 : f32
    %22 = vector.broadcast %cst_8 : f32 to vector<8x1xf32>
    %23 = arith.mulf %21, %22 : vector<8x1xf32>
    %24 = arith.mulf %18, %18 : vector<8x1xf32>
    %25 = arith.subf %23, %24 : vector<8x1xf32>
    %cst_9 = arith.constant 0.000000e+00 : f32
    %26 = vector.broadcast %cst_9 : f32 to vector<8x1xf32>
    %27 = arith.maximumf %25, %26 : vector<8x1xf32>
    %28 = vector.broadcast %18 : vector<8x1xf32> to vector<8x128xf32>
    %29 = arith.subf %14, %28 : vector<8x128xf32>
    %cst_10 = arith.constant 9.99999974E-6 : f32
    %30 = vector.broadcast %cst_10 : f32 to vector<8x1xf32>
    %31 = arith.addf %27, %30 : vector<8x1xf32>
    %32 = math.rsqrt %31 : vector<8x1xf32>
    %33 = vector.broadcast %32 : vector<8x1xf32> to vector<8x128xf32>
    %34 = arith.mulf %29, %33 : vector<8x128xf32>
    %35 = vector.broadcast %2 : vector<1x128xf32> to vector<8x128xf32>
    %36 = arith.mulf %34, %35 : vector<8x128xf32>
    %37 = vector.broadcast %3 : vector<1x128xf32> to vector<8x128xf32>
    %38 = arith.addf %36, %37 : vector<8x128xf32>
    %cst_11 = arith.constant 0.000000e+00 : f32
    %39 = vector.broadcast %cst_11 : f32 to vector<8x128xf32>
    %40 = arith.maximumf %38, %39 : vector<8x128xf32>
    %41 = arith.truncf %40 : vector<8x128xf32> to vector<8x128xbf16>
    %c0_12 = arith.constant 0 : index
    %c0_13 = arith.constant 0 : index
    %c0_14 = arith.constant 0 : index
    %42 = vector.load %arg3[%c0_12, %c0_13, %c0_14] : memref<2x128x128xbf16, #tpu.memory_space<vmem>>, vector<1x128x128xbf16>
    %43 = vector.shape_cast %42 : vector<1x128x128xbf16> to vector<128x128xbf16>
    %cst_15 = arith.constant dense<0.000000e+00> : vector<8x128xf32>
    %44 = tpu.matmul %41, %43, %cst_15 {dimension_numbers = #tpu.dot_dimension_numbers<[1], [0], [0], [1], [0, 0, 1, 1], [], []>} : vector<8x128xbf16>, vector<128x128xbf16>, vector<8x128xf32> -> vector<8x128xf32>
    %45 = vector.broadcast %4 : vector<1x128xf32> to vector<8x128xf32>
    %46 = arith.addf %44, %45 : vector<8x128xf32>
    %cst_16 = arith.constant dense<0.000000e+00> : vector<8xf32>
    %47 = vector.multi_reduction <add>, %46, %cst_16 [1] : vector<8x128xf32> to vector<8xf32>
    %48 = vector.shape_cast %47 : vector<8xf32> to vector<8x1xf32>
    %cst_17 = arith.constant 3.125000e-02 : f32
    %49 = vector.broadcast %cst_17 : f32 to vector<8x1xf32>
    %50 = arith.mulf %48, %49 : vector<8x1xf32>
    %51 = arith.mulf %46, %46 : vector<8x128xf32>
    %cst_18 = arith.constant dense<0.000000e+00> : vector<8xf32>
    %52 = vector.multi_reduction <add>, %51, %cst_18 [1] : vector<8x128xf32> to vector<8xf32>
    %53 = vector.shape_cast %52 : vector<8xf32> to vector<8x1xf32>
    %cst_19 = arith.constant 3.125000e-02 : f32
    %54 = vector.broadcast %cst_19 : f32 to vector<8x1xf32>
    %55 = arith.mulf %53, %54 : vector<8x1xf32>
    %56 = arith.mulf %50, %50 : vector<8x1xf32>
    %57 = arith.subf %55, %56 : vector<8x1xf32>
    %cst_20 = arith.constant 0.000000e+00 : f32
    %58 = vector.broadcast %cst_20 : f32 to vector<8x1xf32>
    %59 = arith.maximumf %57, %58 : vector<8x1xf32>
    %60 = vector.broadcast %50 : vector<8x1xf32> to vector<8x128xf32>
    %61 = arith.subf %46, %60 : vector<8x128xf32>
    %cst_21 = arith.constant 9.99999974E-6 : f32
    %62 = vector.broadcast %cst_21 : f32 to vector<8x1xf32>
    %63 = arith.addf %59, %62 : vector<8x1xf32>
    %64 = math.rsqrt %63 : vector<8x1xf32>
    %65 = vector.broadcast %64 : vector<8x1xf32> to vector<8x128xf32>
    %66 = arith.mulf %61, %65 : vector<8x128xf32>
    %67 = vector.broadcast %5 : vector<1x128xf32> to vector<8x128xf32>
    %68 = arith.mulf %66, %67 : vector<8x128xf32>
    %69 = vector.broadcast %6 : vector<1x128xf32> to vector<8x128xf32>
    %70 = arith.addf %68, %69 : vector<8x128xf32>
    %cst_22 = arith.constant 0.000000e+00 : f32
    %71 = vector.broadcast %cst_22 : f32 to vector<8x128xf32>
    %72 = arith.maximumf %70, %71 : vector<8x128xf32>
    %73 = arith.truncf %72 : vector<8x128xf32> to vector<8x128xbf16>
    %c1 = arith.constant 1 : index
    %c0_23 = arith.constant 0 : index
    %c0_24 = arith.constant 0 : index
    %74 = vector.load %arg3[%c1, %c0_23, %c0_24] : memref<2x128x128xbf16, #tpu.memory_space<vmem>>, vector<1x128x128xbf16>
    %75 = vector.shape_cast %74 : vector<1x128x128xbf16> to vector<128x128xbf16>
    %cst_25 = arith.constant dense<0.000000e+00> : vector<8x128xf32>
    %76 = tpu.matmul %73, %75, %cst_25 {dimension_numbers = #tpu.dot_dimension_numbers<[1], [0], [0], [1], [0, 0, 1, 1], [], []>} : vector<8x128xbf16>, vector<128x128xbf16>, vector<8x128xf32> -> vector<8x128xf32>
    %77 = vector.broadcast %7 : vector<1x128xf32> to vector<8x128xf32>
    %78 = arith.addf %76, %77 : vector<8x128xf32>
    %cst_26 = arith.constant dense<0.000000e+00> : vector<8xf32>
    %79 = vector.multi_reduction <add>, %78, %cst_26 [1] : vector<8x128xf32> to vector<8xf32>
    %80 = vector.shape_cast %79 : vector<8xf32> to vector<8x1xf32>
    %cst_27 = arith.constant 3.125000e-02 : f32
    %81 = vector.broadcast %cst_27 : f32 to vector<8x1xf32>
    %82 = arith.mulf %80, %81 : vector<8x1xf32>
    %83 = arith.mulf %78, %78 : vector<8x128xf32>
    %cst_28 = arith.constant dense<0.000000e+00> : vector<8xf32>
    %84 = vector.multi_reduction <add>, %83, %cst_28 [1] : vector<8x128xf32> to vector<8xf32>
    %85 = vector.shape_cast %84 : vector<8xf32> to vector<8x1xf32>
    %cst_29 = arith.constant 3.125000e-02 : f32
    %86 = vector.broadcast %cst_29 : f32 to vector<8x1xf32>
    %87 = arith.mulf %85, %86 : vector<8x1xf32>
    %88 = arith.mulf %82, %82 : vector<8x1xf32>
    %89 = arith.subf %87, %88 : vector<8x1xf32>
    %cst_30 = arith.constant 0.000000e+00 : f32
    %90 = vector.broadcast %cst_30 : f32 to vector<8x1xf32>
    %91 = arith.maximumf %89, %90 : vector<8x1xf32>
    %92 = vector.broadcast %82 : vector<8x1xf32> to vector<8x128xf32>
    %93 = arith.subf %78, %92 : vector<8x128xf32>
    %cst_31 = arith.constant 9.99999974E-6 : f32
    %94 = vector.broadcast %cst_31 : f32 to vector<8x1xf32>
    %95 = arith.addf %91, %94 : vector<8x1xf32>
    %96 = math.rsqrt %95 : vector<8x1xf32>
    %97 = vector.broadcast %96 : vector<8x1xf32> to vector<8x128xf32>
    %98 = arith.mulf %93, %97 : vector<8x128xf32>
    %99 = vector.broadcast %8 : vector<1x128xf32> to vector<8x128xf32>
    %100 = arith.mulf %98, %99 : vector<8x128xf32>
    %101 = vector.broadcast %9 : vector<1x128xf32> to vector<8x128xf32>
    %102 = arith.addf %100, %101 : vector<8x128xf32>
    %103 = vector.extract_strided_slice %102 {offsets = [0, 0], sizes = [8, 32], strides = [1, 1]} : vector<8x128xf32> to vector<8x32xf32>
    %c0_32 = arith.constant 0 : index
    %c0_33 = arith.constant 0 : index
    %104 = vector.load %arg5[%c0_32, %c0_33] : memref<8x32xf32, #tpu.memory_space<vmem>>, vector<8x32xf32>
    tpu.vector_store %arg5[%c0_32, %c0_33], %103 {strides = array<i32>} : memref<8x32xf32, #tpu.memory_space<vmem>>, vector<8x32xf32>,
    return
  }
  func.func @transform_0(%arg0: i32) -> (i32, i32) {
    %c0_i32 = arith.constant 0 : i32
    %c0_i32_0 = arith.constant 0 : i32
    return %arg0, %c0_i32 : i32, i32
  }
  func.func @transform_1(%arg0: i32) -> (i32, i32) {
    %c0_i32 = arith.constant 0 : i32
    %c0_i32_0 = arith.constant 0 : i32
    %c0_i32_1 = arith.constant 0 : i32
    return %c0_i32, %c0_i32_0 : i32, i32
  }
  func.func @transform_2(%arg0: i32) -> (i32, i32, i32) {
    %c0_i32 = arith.constant 0 : i32
    %c0_i32_0 = arith.constant 0 : i32
    %c0_i32_1 = arith.constant 0 : i32
    %c0_i32_2 = arith.constant 0 : i32
    return %c0_i32, %c0_i32_0, %c0_i32_1 : i32, i32, i32
  }
  func.func @transform_3(%arg0: i32) -> (i32, i32) {
    %c0_i32 = arith.constant 0 : i32
    %c0_i32_0 = arith.constant 0 : i32
    %c0_i32_1 = arith.constant 0 : i32
    return %c0_i32, %c0_i32_0 : i32, i32
  }
  func.func @transform_4(%arg0: i32) -> (i32, i32) {
    %c0_i32 = arith.constant 0 : i32
    %c0_i32_0 = arith.constant 0 : i32
    return %arg0, %c0_i32 : i32, i32
  }
}

</mosaic_0001>

<llo_original>
// kernel: tpu_custom_call.1
$region0: #{tpu_custom_call.1}
  #allocation0 [shape = 'u32[]', space=smem, size = 0x4, offset = 0x4, fixed_abs, tag = 'smem constant byte address 0x4 - core index']
  #allocation1 [shape = 'u32[72,128]{1,0:T(1,128)}', space=vmem, size = 0x9000, scoped, tag = 'internal scratch']
  %s0 = inlined_call_operand.vmem [shape: f32[16,8], index: 0, kind: input, shape index: {}]
  %s1 = inlined_call_operand.vmem [shape: f32[8,128], index: 1, kind: input, shape index: {}]
  %s2 = inlined_call_operand.hbm [shape: bf16[2,128,128], index: 2, kind: input, shape index: {}]
  %s3 = inlined_call_operand.vmem [shape: f32[16,128], index: 3, kind: input, shape index: {}]
  %s4 = inlined_call_operand.hbm [shape: f32[16,32], index: 4, kind: output, shape index: {}]
  %s5 = sld [smem:[#allocation0]]
  $region53: #{tpu_custom_call.1} parent=0
    _
  %s7 = ssub.s32 1, %s5
  %s8 = scalar_select 0, %s7, %s5
  $region1: #{tpu_custom_call.1} parent=0
    #allocation2 [shape = 'u8[65536]{0}', space=vmem, size = 0x10000, scoped, tag = 'input window, operand 2, single buffered']
    #allocation3 [shape = 's32[2]{0}', space=sflag, size = 0x8, scoped, tag = 'scoped memory for tpu_custom_call.1']
    #allocation4 [shape = 's32[2]{0}', space=sflag, size = 0x8, scoped, tag = 'scoped memory for tpu_custom_call.1']
    #allocation5 [shape = 'u8[8192]{0}', space=vmem, size = 0x2000, scoped, tag = 'output window, operand 0']
    %9 = vsyncpa [#allocation3], 0
    %10 = vsyncpa [#allocation4], 0
    %s11 = scalar_lea.sflag [#allocation4], 1
    %12 = vsyncpa %s11, 0
    loop: start=0, step=1, limit=4
    $region2: #{tpu_custom_call.1} parent=1 // loop_pre_header
      _
    $region3: #{tpu_custom_call.1} parent=1 // loop_header
      %s14 = sphi 0, %s18
      %p15 = scmp.ge.s32.totalorder %s14, 4
      %s24 = sphi 0, %s26
      %s27 = sphi 0, %s24
      %s28 = sphi 0, %s27
      %s44 = sphi 0, %s28
      %s48 = sphi 0, %s48
      %s50 = sphi 0, %s48
      %s51 = sphi 0, %s50
      %s65 = sphi 0, %s51
      %s69 = sphi 0, %s69
      %s71 = sphi 0, %s69
      %s72 = sphi 0, %s71
      %s86 = sphi 0, %s72
      %s90 = sphi 0, %s90
      %s92 = sphi 0, %s90
      %s93 = sphi 0, %s92
      %s107 = sphi 0, %s93
      %s113 = sphi 0, %s115
      %s116 = sphi 0, %s113
      %s117 = sphi 0, %s116
      %s133 = sphi 0, %s117
    $region4: #{tpu_custom_call.1} parent=1 // loop_header_branch
      %17 = sbr.rel (%p15) target = $region8
    $region5: #{tpu_custom_call.1} parent=1 // loop_body
      %s19 = ssub.s32 %s14, 1
      %s20 = ssub.s32 %s14, 2
      %s21 = sadd.s32 %s14, 1
      %s22 = ssub.s32 %s14, %s21
      %p23 = scmp.eq.s32.totalorder %s22, 0
      %s25 = sadd.s32 %s24, 1
      %s26 = scalar_select %p23, %s24, %s25
      %p29 = pneg %p23
      %p30 = scmp.eq.s32.totalorder %s14, 1
      %p31 = por %p29, %p30
      %p32 = scmp.ne.s32.totalorder %s24, %s27
      %p33 = scmp.eq.s32.totalorder %s14, 0
      %p34 = por %p32, %p33
      %p35 = scmp.ne.s32.totalorder %s24, %s27
      %p36 = scmp.eq.s32.totalorder %s19, 1
      %p37 = por %p35, %p36
      %p38 = scmp.ne.s32.totalorder %s27, %s28
      %p39 = scmp.eq.s32.totalorder %s19, 0
      %p40 = por %p38, %p39
      %p41 = scmp.ne.s32.totalorder %s27, %s28
      %p42 = scmp.eq.s32.totalorder %s20, 1
      %p43 = por %p41, %p42
      %p45 = scmp.ne.s32.totalorder %s28, %s44
      %p46 = scmp.eq.s32.totalorder %s20, 0
      %p47 = por %p45, %p46
      %s49 = sadd.s32 %s48, 1
      %p52 = scmp.eq.s32.totalorder %s14, 1
      %p53 = scmp.ne.s32.totalorder %s48, %s50
      %p54 = scmp.eq.s32.totalorder %s14, 0
      %p55 = por %p53, %p54
      %p56 = scmp.ne.s32.totalorder %s48, %s50
      %p57 = scmp.eq.s32.totalorder %s19, 1
      %p58 = por %p56, %p57
      %p59 = scmp.ne.s32.totalorder %s50, %s51
      %p60 = scmp.eq.s32.totalorder %s19, 0
      %p61 = por %p59, %p60
      %p62 = scmp.ne.s32.totalorder %s50, %s51
      %p63 = scmp.eq.s32.totalorder %s20, 1
      %p64 = por %p62, %p63
      %p66 = scmp.ne.s32.totalorder %s51, %s65
      %p67 = scmp.eq.s32.totalorder %s20, 0
      %p68 = por %p66, %p67
      %s70 = sadd.s32 %s69, 1
      %p73 = scmp.eq.s32.totalorder %s14, 1
      %p74 = scmp.ne.s32.totalorder %s69, %s71
      %p75 = scmp.eq.s32.totalorder %s14, 0
      %p76 = por %p74, %p75
      %p77 = scmp.ne.s32.totalorder %s69, %s71
      %p78 = scmp.eq.s32.totalorder %s19, 1
      %p79 = por %p77, %p78
      %p80 = scmp.ne.s32.totalorder %s71, %s72
      %p81 = scmp.eq.s32.totalorder %s19, 0
      %p82 = por %p80, %p81
      %p83 = scmp.ne.s32.totalorder %s71, %s72
      %p84 = scmp.eq.s32.totalorder %s20, 1
      %p85 = por %p83, %p84
      %p87 = scmp.ne.s32.totalorder %s72, %s86
      %p88 = scmp.eq.s32.totalorder %s20, 0
      %p89 = por %p87, %p88
      %s91 = sadd.s32 %s90, 1
      %p94 = scmp.eq.s32.totalorder %s14, 1
      %p95 = scmp.ne.s32.totalorder %s90, %s92
      %p96 = scmp.eq.s32.totalorder %s14, 0
      %p97 = por %p95, %p96
      %p98 = scmp.ne.s32.totalorder %s90, %s92
      %p99 = scmp.eq.s32.totalorder %s19, 1
      %p100 = por %p98, %p99
      %p101 = scmp.ne.s32.totalorder %s92, %s93
      %p102 = scmp.eq.s32.totalorder %s19, 0
      %p103 = por %p101, %p102
      %p104 = scmp.ne.s32.totalorder %s92, %s93
      %p105 = scmp.eq.s32.totalorder %s20, 1
      %p106 = por %p104, %p105
      %p108 = scmp.ne.s32.totalorder %s93, %s107
      %p109 = scmp.eq.s32.totalorder %s20, 0
      %p110 = por %p108, %p109
      %s111 = ssub.s32 %s14, %s21
      %p112 = scmp.eq.s32.totalorder %s111, 0
      %s114 = sadd.s32 %s113, 1
      %s115 = scalar_select %p112, %s113, %s114
      %p118 = pneg %p112
      %p119 = scmp.eq.s32.totalorder %s14, 1
      %p120 = por %p118, %p119
      %p121 = scmp.ne.s32.totalorder %s113, %s116
      %p122 = scmp.eq.s32.totalorder %s14, 0
      %p123 = por %p121, %p122
      %p124 = scmp.ne.s32.totalorder %s113, %s116
      %p125 = scmp.eq.s32.totalorder %s19, 1
      %p126 = por %p124, %p125
      %p127 = scmp.ne.s32.totalorder %s116, %s117
      %p128 = scmp.eq.s32.totalorder %s19, 0
      %p129 = por %p127, %p128
      %p130 = scmp.ne.s32.totalorder %s116, %s117
      %p131 = scmp.eq.s32.totalorder %s20, 1
      %p132 = por %p130, %p131
      %p134 = scmp.ne.s32.totalorder %s117, %s133
      %p135 = scmp.eq.s32.totalorder %s20, 0
      %p136 = por %p134, %p135
      %p137 = scmp.le.s32.totalorder 1, %s14
      %p138 = scmp.lt.s32.totalorder %s14, 3
      %p139 = pnand %p137, %p138
      %p140 = pneg %p139
      // Predicated region
      $region9: #{tpu_custom_call.1} parent=5 // pred_check
        _
      $region10: #{tpu_custom_call.1} parent=5 // pred_check_branch
        %142 = sbr.rel (%p139) target = $region12
      $region11: #{tpu_custom_call.1} parent=5 // pred_region
        %s143 = ssub.s32 %s14, 1
        // Predicated region
        $region13: #{tpu_custom_call.1} parent=11 // pred_check
          %p144 = pneg %p61
        $region14: #{tpu_custom_call.1} parent=11 // pred_check_branch
          %146 = sbr.rel (%p144) target = $region16
        $region15: #{tpu_custom_call.1} parent=11 // pred_region
          _
        $region16: #{tpu_custom_call.1} parent=11 // pred_fallthru
          _
        // Predicated region
        $region17: #{tpu_custom_call.1} parent=11 // pred_check
          %p147 = pneg %p82
        $region18: #{tpu_custom_call.1} parent=11 // pred_check_branch
          %149 = sbr.rel (%p147) target = $region20
        $region19: #{tpu_custom_call.1} parent=11 // pred_region
          %151 = vsyncadd [#allocation3], 0
          %s152 = sshll.u32 %s2, 4
          %s153 = int_to_ptr.hbm [resolvable:$true] %s152
          %s154 = sshll.u32 [#allocation2], 4
          %s155 = int_to_ptr.vmem [resolvable:$true] %s154
          %160 = dma.hbm_to_vmem [thread:$0]  %s153, 2048, %s155, [#allocation3], 64, 64, 4
        $region20: #{tpu_custom_call.1} parent=11 // pred_fallthru
          _
        // Predicated region
        $region21: #{tpu_custom_call.1} parent=11 // pred_check
          %p161 = pneg %p103
        $region22: #{tpu_custom_call.1} parent=11 // pred_check_branch
          %163 = sbr.rel (%p161) target = $region24
        $region23: #{tpu_custom_call.1} parent=11 // pred_region
          _
        $region24: #{tpu_custom_call.1} parent=11 // pred_fallthru
          _
      $region12: #{tpu_custom_call.1} parent=5 // pred_fallthru
        _
      %p164 = scmp.lt.s32.totalorder %s14, 2
      // Predicated region
      $region25: #{tpu_custom_call.1} parent=5 // pred_check
        %p165 = pneg %p164
      $region26: #{tpu_custom_call.1} parent=5 // pred_check_branch
        %167 = sbr.rel (%p165) target = $region28
      $region27: #{tpu_custom_call.1} parent=5 // pred_region
        // Predicated region
        $region29: #{tpu_custom_call.1} parent=27 // pred_check
          %p168 = pneg %p34
        $region30: #{tpu_custom_call.1} parent=27 // pred_check_branch
          %170 = sbr.rel (%p168) target = $region32
        $region31: #{tpu_custom_call.1} parent=27 // pred_region
          %p171 = scmp.lt.s32.totalorder %s14, 1
          %s172 = scalar_select %p171, %s14, 1
          %s173 = smul.addr %s172, 8
          %s174 = scalar_lea.vmem %s0, %s173
        $region32: #{tpu_custom_call.1} parent=27 // pred_fallthru
          _
      $region28: #{tpu_custom_call.1} parent=5 // pred_fallthru
        _
      %p175 = scmp.le.s32.totalorder 1, %s14
      %p176 = scmp.lt.s32.totalorder %s14, 3
      %p177 = pnand %p175, %p176
      %p178 = pneg %p177
      // Predicated region
      $region33: #{tpu_custom_call.1} parent=5 // pred_check
        _
      $region34: #{tpu_custom_call.1} parent=5 // pred_check_branch
        %180 = sbr.rel (%p177) target = $region36
      $region35: #{tpu_custom_call.1} parent=5 // pred_region
        %s181 = ssub.s32 %s14, 1
        // Predicated region
        $region37: #{tpu_custom_call.1} parent=35 // pred_check
          %p182 = pneg %p82
        $region38: #{tpu_custom_call.1} parent=35 // pred_check_branch
          %184 = sbr.rel (%p182) target = $region40
        $region39: #{tpu_custom_call.1} parent=35 // pred_region
          %186 = dma.done [#allocation3], 2048
        $region40: #{tpu_custom_call.1} parent=35 // pred_fallthru
          _
        %p187 = scmp.lt.s32.totalorder %s19, 1
        %s188 = scalar_select %p187, %s19, 1
        %s189 = smul.addr %s188, 8
        %s190 = scalar_lea.vmem %s0, %s189
        %p191 = pneg %p40
        %p192 = pneg %p37
        %p193 = pneg %p61
        %p194 = pneg %p58
        %p195 = pneg %p82
        %p196 = pneg %p79
        %p197 = pneg %p103
        %p198 = pneg %p100
        %p199 = pneg %p129
        %p200 = pneg %p126
        %s201 = sand.u32 %s116, 1
        %s202 = scalar_lea.sflag [#allocation4], %s201
        %s203 = sand.u32 %s116, 1
        %s204 = smul.addr %s203, 8
        %s205 = scalar_lea.vmem [#allocation5], %s204
        %p206 = scmp.lt.s32.totalorder %s19, 1
        %s207 = scalar_select %p206, %s19, 1
        %s208 = smul.addr %s207, 8
        %s209 = scalar_lea.vmem %s0, %s208
        %v210 = vld [vmem:[%s3] sm:$0xff]
        %v211 = vld [vmem:[%s3 + $0x8] sm:$0xff]
        %v212 = vld [vmem:[%s209] sm:$0xff]
        %v213 = vld [vmem:[%s1] sm:$0xff]
        %v214 = vperm.slane %v210, 0
        %vm215 = vcmask 64512
        %v217 = vsel %vm215, %v212, 0
        %219 = vmatpush.msra.mxu0 0.0
        %220 = vmatpush.msra.mxu0 0.0
        %221 = vmatpush.msra.mxu0 0.0
        %222 = vmatpush.msra.mxu0 0.0
        %223 = vmatpush.msra.mxu0 0.0
        %224 = vmatpush.msra.mxu0 0.0
        %225 = vmatpush.msra.mxu0 0.0
        %226 = vmatpush.msra.mxu0 0.0
        %227 = vmatpush.msra.mxu0 0.0
        %228 = vmatpush.msra.mxu0 0.0
        %229 = vmatpush.msra.mxu0 0.0
        %230 = vmatpush.msra.mxu0 0.0
        %231 = vmatpush.msra.mxu0 0.0
        %232 = vmatpush.msra.mxu0 0.0
        %233 = vmatpush.msra.mxu0 0.0
        %234 = vmatpush.msra.mxu0 %v213
        %235 = vmatmul.f32.gmra.mxu0 %v217
        %v236 = vpop.f32.mrf.mxu0
        %v237 = vadd.f32 %v214, %v236
        %238 = vdwg.mxu0
        %239 = vadd.xlane.f32.xlu0 %v237
        %v240 = vpop.xlane.xlu0 %239
        %v241 = vmul.f32 %v240, 0.03125
        %v242 = vmul.f32 %v237, %v237
        %243 = vadd.xlane.f32.xlu0 %v242
        %v244 = vpop.xlane.xlu0 %243
        %v245 = vmul.f32 %v244, 0.03125
        %v246 = vmul.f32 %v241, %v241
        %v247 = vsub.f32 %v245, %v246
        %v248 = vmax.f32 %v247, 0.0
        %v249 = vsub.f32 %v237, %v241
        %v250 = vadd.f32 %v248, 1e-05
        %v251 = vrsqrt.pop %v250
        %v252 = vmul.f32 %v251, %v250
        %v253 = vmul.f32 %v252, %v251
        %v254 = vmul.f32 0.5, %v253
        %v255 = vsub.f32 1.5, %v254
        %v256 = vmul.f32 %v251, %v255
        %vm257 = vweird.f32 %v250
        %vm258 = vweird.f32 %v251
        %vm259 = vmor %vm257, %vm258
        %v260 = vsel %vm259, %v251, %v256
        %v261 = vmul.f32 %v249, %v260
        %v262 = vperm.slane %v210, 1
        %v263 = vmul.f32 %v261, %v262
        %v264 = vperm.slane %v210, 2
        %v265 = vadd.f32 %v263, %v264
        %v266 = vmax.f32 %v265, 0.0
        %v267 = vpack.c.bf16 %v266, %v266
        %v268 = vld [vmem:[#allocation2] sm:$0xf]
        %v269 = vld [vmem:[#allocation2 + $0x4] sm:$0xf]
        %v270 = vld [vmem:[#allocation2 + $0x8] sm:$0xf]
        %v271 = vld [vmem:[#allocation2 + $0xc] sm:$0xf]
        %v272 = vld [vmem:[#allocation2 + $0x10] sm:$0xf]
        %v273 = vld [vmem:[#allocation2 + $0x14] sm:$0xf]
        %v274 = vld [vmem:[#allocation2 + $0x18] sm:$0xf]
        %v275 = vld [vmem:[#allocation2 + $0x1c] sm:$0xf]
        %v276 = vld [vmem:[#allocation2 + $0x20] sm:$0xf]
        %v277 = vld [vmem:[#allocation2 + $0x24] sm:$0xf]
        %v278 = vld [vmem:[#allocation2 + $0x28] sm:$0xf]
        %v279 = vld [vmem:[#allocation2 + $0x2c] sm:$0xf]
        %v280 = vld [vmem:[#allocation2 + $0x30] sm:$0xf]
        %v281 = vld [vmem:[#allocation2 + $0x34] sm:$0xf]
        %v282 = vld [vmem:[#allocation2 + $0x38] sm:$0xf]
        %v283 = vld [vmem:[#allocation2 + $0x3c] sm:$0xf]
        %v284 = vperm.slane %v210, 3
        %v301 = vunpack.c.l.b16 %v268
        %v302 = vunpack.c.l.b16 %v269
        %v303 = vunpack.c.l.b16 %v270
        %v304 = vunpack.c.l.b16 %v271
        %v305 = vunpack.c.l.b16 %v272
        %v306 = vunpack.c.l.b16 %v273
        %v307 = vunpack.c.l.b16 %v274
        %v308 = vunpack.c.l.b16 %v275
        %v309 = vunpack.c.l.b16 %v276
        %v310 = vunpack.c.l.b16 %v277
        %v311 = vunpack.c.l.b16 %v278
        %v312 = vunpack.c.l.b16 %v279
        %v313 = vunpack.c.l.b16 %v280
        %v314 = vunpack.c.l.b16 %v281
        %v315 = vunpack.c.l.b16 %v282
        %v316 = vunpack.c.l.b16 %v283
        %v317 = vpack.c.b16 %v302, %v301
        %v318 = vpack.c.b16 %v304, %v303
        %v319 = vpack.c.b16 %v306, %v305
        %v320 = vpack.c.b16 %v308, %v307
        %v321 = vpack.c.b16 %v310, %v309
        %v322 = vpack.c.b16 %v312, %v311
        %v323 = vpack.c.b16 %v314, %v313
        %v324 = vpack.c.b16 %v316, %v315
        %333 = vmatpush.bf16.msra.mxu0 %v324
        %334 = vmatpush.bf16.msra.mxu0 %v323
        %335 = vmatpush.bf16.msra.mxu0 %v322
        %336 = vmatpush.bf16.msra.mxu0 %v321
        %337 = vmatpush.bf16.msra.mxu0 %v320
        %338 = vmatpush.bf16.msra.mxu0 %v319
        %339 = vmatpush.bf16.msra.mxu0 %v318
        %340 = vmatpush.bf16.msra.mxu0 %v317
        %341 = vmatmul.bf16.gmra.mxu0 %v267
        %v342 = vpop.f32.mrf.mxu0
        %v343 = vadd.f32 %v284, %v342
        %v344 = vpop.f32.mrf.mxu0
        %345 = vdwg.mxu0
        %346 = vadd.xlane.f32.xlu0 %v343
        %v347 = vpop.xlane.xlu0 %346
        %v348 = vmul.f32 %v347, 0.03125
        %v349 = vmul.f32 %v343, %v343
        %350 = vadd.xlane.f32.xlu0 %v349
        %v351 = vpop.xlane.xlu0 %350
        %v352 = vmul.f32 %v351, 0.03125
        %v353 = vmul.f32 %v348, %v348
        %v354 = vsub.f32 %v352, %v353
        %v355 = vmax.f32 %v354, 0.0
        %v356 = vsub.f32 %v343, %v348
        %v357 = vadd.f32 %v355, 1e-05
        %v358 = vrsqrt.pop %v357
        %v359 = vmul.f32 %v358, %v357
        %v360 = vmul.f32 %v359, %v358
        %v361 = vmul.f32 0.5, %v360
        %v362 = vsub.f32 1.5, %v361
        %v363 = vmul.f32 %v358, %v362
        %vm364 = vweird.f32 %v357
        %vm365 = vweird.f32 %v358
        %vm366 = vmor %vm364, %vm365
        %v367 = vsel %vm366, %v358, %v363
        %v368 = vmul.f32 %v356, %v367
        %v369 = vperm.slane %v210, 4
        %v370 = vmul.f32 %v368, %v369
        %v371 = vperm.slane %v210, 5
        %v372 = vadd.f32 %v370, %v371
        %v373 = vmax.f32 %v372, 0.0
        %v374 = vpack.c.bf16 %v373, %v373
        %s375 = scalar_lea.vmem [#allocation2], 64
        %v376 = vld [vmem:[%s375] sm:$0xf]
        %v377 = vld [vmem:[%s375 + $0x4] sm:$0xf]
        %v378 = vld [vmem:[%s375 + $0x8] sm:$0xf]
        %v379 = vld [vmem:[%s375 + $0xc] sm:$0xf]
        %v380 = vld [vmem:[%s375 + $0x10] sm:$0xf]
        %v381 = vld [vmem:[%s375 + $0x14] sm:$0xf]
        %v382 = vld [vmem:[%s375 + $0x18] sm:$0xf]
        %v383 = vld [vmem:[%s375 + $0x1c] sm:$0xf]
        %v384 = vld [vmem:[%s375 + $0x20] sm:$0xf]
        %v385 = vld [vmem:[%s375 + $0x24] sm:$0xf]
        %v386 = vld [vmem:[%s375 + $0x28] sm:$0xf]
        %v387 = vld [vmem:[%s375 + $0x2c] sm:$0xf]
        %v388 = vld [vmem:[%s375 + $0x30] sm:$0xf]
        %v389 = vld [vmem:[%s375 + $0x34] sm:$0xf]
        %v390 = vld [vmem:[%s375 + $0x38] sm:$0xf]
        %v391 = vld [vmem:[%s375 + $0x3c] sm:$0xf]
        %v392 = vperm.slane %v210, 6
        %v409 = vunpack.c.l.b16 %v376
        %v410 = vunpack.c.l.b16 %v377
        %v411 = vunpack.c.l.b16 %v378
        %v412 = vunpack.c.l.b16 %v379
        %v413 = vunpack.c.l.b16 %v380
        %v414 = vunpack.c.l.b16 %v381
        %v415 = vunpack.c.l.b16 %v382
        %v416 = vunpack.c.l.b16 %v383
        %v417 = vunpack.c.l.b16 %v384
        %v418 = vunpack.c.l.b16 %v385
        %v419 = vunpack.c.l.b16 %v386
        %v420 = vunpack.c.l.b16 %v387
        %v421 = vunpack.c.l.b16 %v388
        %v422 = vunpack.c.l.b16 %v389
        %v423 = vunpack.c.l.b16 %v390
        %v424 = vunpack.c.l.b16 %v391
        %v425 = vpack.c.b16 %v410, %v409
        %v426 = vpack.c.b16 %v412, %v411
        %v427 = vpack.c.b16 %v414, %v413
        %v428 = vpack.c.b16 %v416, %v415
        %v429 = vpack.c.b16 %v418, %v417
        %v430 = vpack.c.b16 %v420, %v419
        %v431 = vpack.c.b16 %v422, %v421
        %v432 = vpack.c.b16 %v424, %v423
        %441 = vmatpush.bf16.msra.mxu0 %v432
        %442 = vmatpush.bf16.msra.mxu0 %v431
        %443 = vmatpush.bf16.msra.mxu0 %v430
        %444 = vmatpush.bf16.msra.mxu0 %v429
        %445 = vmatpush.bf16.msra.mxu0 %v428
        %446 = vmatpush.bf16.msra.mxu0 %v427
        %447 = vmatpush.bf16.msra.mxu0 %v426
        %448 = vmatpush.bf16.msra.mxu0 %v425
        %449 = vmatmul.bf16.gmra.mxu0 %v374
        %v450 = vpop.f32.mrf.mxu0
        %v451 = vadd.f32 %v392, %v450
        %v452 = vpop.f32.mrf.mxu0
        %453 = vdwg.mxu0
        %454 = vadd.xlane.f32.xlu0 %v451
        %v455 = vpop.xlane.xlu0 %454
        %v456 = vmul.f32 %v455, 0.03125
        %v457 = vmul.f32 %v451, %v451
        %458 = vadd.xlane.f32.xlu0 %v457
        %v459 = vpop.xlane.xlu0 %458
        %v460 = vmul.f32 %v459, 0.03125
        %v461 = vmul.f32 %v456, %v456
        %v462 = vsub.f32 %v460, %v461
        %v463 = vmax.f32 %v462, 0.0
        %v464 = vsub.f32 %v451, %v456
        %v465 = vadd.f32 %v463, 1e-05
        %v466 = vrsqrt.pop %v465
        %v467 = vmul.f32 %v466, %v465
        %v468 = vmul.f32 %v467, %v466
        %v469 = vmul.f32 0.5, %v468
        %v470 = vsub.f32 1.5, %v469
        %v471 = vmul.f32 %v466, %v470
        %vm472 = vweird.f32 %v465
        %vm473 = vweird.f32 %v466
        %vm474 = vmor %vm472, %vm473
        %v475 = vsel %vm474, %v466, %v471
        %v476 = vmul.f32 %v464, %v475
        %v477 = vperm.slane %v210, 7
        %v478 = vmul.f32 %v476, %v477
        %v479 = vperm.slane %v211, 0
        %v480 = vadd.f32 %v478, %v479
        %vm481 = vcmask 261120
        %482 = vst.msk [vmem:[%s205] sm:$0xff] %vm481, %v480
        %s483 = sand.u32 %s116, 1
        %s484 = scalar_lea.sflag [#allocation4], %s483
        %s485 = sand.u32 %s116, 1
        %s486 = smul.addr %s485, 8
        %s487 = scalar_lea.vmem [#allocation5], %s486
        // Predicated region
        $region41: #{tpu_custom_call.1} parent=35 // pred_check
          %p488 = pneg %p126
        $region42: #{tpu_custom_call.1} parent=35 // pred_check_branch
          %490 = sbr.rel (%p488) target = $region44
        $region43: #{tpu_custom_call.1} parent=35 // pred_region
          %492 = vsyncadd %s484, 0
          %s493 = smul.addr %s19, 8
          %s494 = scalar_lea.hbm %s4, %s493
          %s496 = sshll.u32 %s487, 4
          %s497 = int_to_ptr.vmem [resolvable:$true] %s496
          %s498 = sshll.u32 %s494, 4
          %s499 = int_to_ptr.hbm [resolvable:$true] %s498
          %501 = dma.vmem_to_hbm [thread:$0]  %s497, 128, %s499, %s484
        $region44: #{tpu_custom_call.1} parent=35 // pred_fallthru
          _
      $region36: #{tpu_custom_call.1} parent=5 // pred_fallthru
        _
      %p502 = scmp.le.s32.totalorder 2, %s14
      // Predicated region
      $region45: #{tpu_custom_call.1} parent=5 // pred_check
        %p503 = pneg %p502
      $region46: #{tpu_custom_call.1} parent=5 // pred_check_branch
        %505 = sbr.rel (%p503) target = $region48
      $region47: #{tpu_custom_call.1} parent=5 // pred_region
        %s506 = ssub.s32 %s14, 2
        // Predicated region
        $region49: #{tpu_custom_call.1} parent=47 // pred_check
          %p507 = pneg %p132
        $region50: #{tpu_custom_call.1} parent=47 // pred_check_branch
          %509 = sbr.rel (%p507) target = $region52
        $region51: #{tpu_custom_call.1} parent=47 // pred_region
          %s510 = sand.u32 %s117, 1
          %s511 = scalar_lea.sflag [#allocation4], %s510
          %s512 = sand.u32 %s117, 1
          %s513 = smul.addr %s512, 8
          %s514 = scalar_lea.vmem [#allocation5], %s513
          %516 = dma.done %s511, 128
        $region52: #{tpu_custom_call.1} parent=47 // pred_fallthru
          _
      $region48: #{tpu_custom_call.1} parent=5 // pred_fallthru
        _
    $region6: #{tpu_custom_call.1} parent=1 // loop_footer
      %s18 = sadd.s32 1, %s14
    $region7: #{tpu_custom_call.1} parent=1 // loop_footer_branch
      %13 = sbr.rel target = $region3
    $region8: #{tpu_custom_call.1} parent=1 // loop_exit
      _
    %517 = vsyncpa [#allocation3], 1
    %s518 = scalar_lea.sflag [#allocation3], 1
    %519 = vsyncpa %s518, 1
    %520 = vsyncpa [#allocation4], 1
    %s521 = scalar_lea.sflag [#allocation4], 1
    %522 = vsyncpa %s521, 1

</llo_original>
